<compile_context>
chip_gen: v5e
topology: v5e:2x2
jax: 0.10.0
libtpu: 0.0.40
codegen_flags: <defaults>
</compile_context>

<pallas_src>
import math
import jax
import jax.numpy as jnp
from jax.experimental import pallas as pl
from jax.experimental.pallas import tpu as pltpu


def _round_up(v, m):
    return (v + m - 1) // m * m


def _make_combiner_kernel(C, mm_dtype):
    def kernel(xtm_ref, xtr_ref, w_ref, o_ref):
        # xtm_ref / xtr_ref / o_ref : (1, C, hw_tile)  -- channels on sublanes,
        #                                                 H*W on lanes.
        # w_ref                     : (2, 2C, 2C)      -- block-diag fused
        #                                                 [W1_bd, W2_bd].
        xtm = xtm_ref[0]                                   # (C, hw)
        xtr = xtr_ref[0]                                   # (C, hw)

        # One matmul stream for both branches (block-diagonal weights).
        x_cat = jnp.concatenate([xtm, xtr], axis=0).astype(mm_dtype)   # (2C, hw)

        h = jnp.maximum(
            jnp.dot(w_ref[0], x_cat, preferred_element_type=jnp.float32), 0.0)
        logits = jnp.dot(w_ref[1], h.astype(mm_dtype),
                         preferred_element_type=jnp.float32)
        g = jax.nn.sigmoid(logits)                         # (2C, hw), f32

        # Gating + branch sum kept in f32.
        out = g[:C] * xtm.astype(jnp.float32) + g[C:] * xtr.astype(jnp.float32)
        o_ref[0] = out.astype(o_ref.dtype)

    return kernel


def combiner_pallas(x_tm, x_tr, params, *, max_hw_tile=2048,
                    matmul_dtype=jnp.bfloat16):
    """x_tm, x_tr: (1, S, C, H, W).  params: dict of (C, C) weights in PyTorch
    nn.Linear layout (out_features, in_features), bias=False as in the module."""
    assert x_tm.ndim == 5 and x_tr.ndim == 5
    _, S, C, H, W = x_tm.shape
    HW = H * W

    # Channel-major token slabs: pure reshape, no transpose, no HBM round-trip.
    xtm2 = x_tm.reshape(S, C, HW)
    xtr2 = x_tr.reshape(S, C, HW)

    # Lane axis = HW.  Pad to a multiple of 128 (and of the tile) so stores are
    # unmasked and the last block is never ragged.
    hw_tile = min(_round_up(max_hw_tile, 128), _round_up(HW, 128))
    HW_pad = _round_up(HW, hw_tile)
    if HW_pad != HW:
        pad = HW_pad - HW
        xtm2 = jnp.pad(xtm2, ((0, 0), (0, 0), (0, pad)))
        xtr2 = jnp.pad(xtr2, ((0, 0), (0, 0), (0, pad)))

    # nn.Linear computes y = x @ W^T; in channel-major form that is W @ x_cm,
    # so weights are used UN-transposed.  Fuse the two branches block-diagonally.
    z = jnp.zeros((C, C), jnp.float32)
    w1_bd = jnp.block([[params["tm_1"], z], [z, params["tr_1"]]])   # (2C, 2C)
    w2_bd = jnp.block([[params["tm_2"], z], [z, params["tr_2"]]])   # (2C, 2C)
    w_fused = jnp.stack([w1_bd, w2_bd]).astype(matmul_dtype)        # (2, 2C, 2C)

    grid = (S, HW_pad // hw_tile)
    # TODO(synk): for very small H*W and large S, fold several sequences per
    # grid step to amortize the ~0.35us per-step overhead.

    x_spec = pl.BlockSpec((1, C, hw_tile), lambda s, j: (s, 0, j))
    w_spec = pl.BlockSpec((2, 2 * C, 2 * C), lambda s, j: (0, 0, 0))

    out2 = pl.pallas_call(
        _make_combiner_kernel(C, matmul_dtype),
        out_shape=jax.ShapeDtypeStruct((S, C, HW_pad), x_tm.dtype),
        grid_spec=pltpu.PrefetchScalarGridSpec(
            num_scalar_prefetch=0,
            grid=grid,
            in_specs=[x_spec, x_spec, w_spec],
            out_specs=x_spec,
        ),
        compiler_params=pltpu.CompilerParams(
            # Both grid axes independent -> megacore / v7x dual-TC sharding.
            dimension_semantics=("parallel", "parallel")),
    )(xtm2, xtr2, w_fused)

    if HW_pad != HW:
        out2 = out2[:, :, :HW]
    return out2.reshape(1, S, C, H, W)


def init_params(num_filters, key):
    """Deterministic init matching nn.Linear weight.data.normal_(0, sqrt(2/out)),
    bias=False exactly as in the PyTorch module."""
    std = math.sqrt(2.0 / num_filters)
    keys = jax.random.split(key, 4)
    names = ["tm_1", "tm_2", "tr_1", "tr_2"]
    return {n: std * jax.random.normal(k, (num_filters, num_filters),
                                       dtype=jnp.float32)
            for n, k in zip(names, keys)}


def combiner_reference(x_tm, x_tr, params):
    """Pure-JAX f32 reference mirroring the PyTorch forward."""
    _, S, C, H, W = x_tm.shape

    def branch(x, w1, w2):
        x = x.reshape(-1, C, H * W)
        x = jnp.transpose(x, (0, 2, 1))          # (S, HW, C)
        r = jnp.maximum(x @ w1.T, 0.0)
        g = jax.nn.sigmoid(r @ w2.T)
        x = g * x
        x = jnp.transpose(x, (0, 2, 1))
        return x.reshape(1, S, C, H, W)

    tm = branch(x_tm, params["tm_1"], params["tm_2"])
    tr = branch(x_tr, params["tr_1"], params["tr_2"])
    return tm + tr


if __name__ == "__main__":
    key = jax.random.PRNGKey(0)
    kp, k1, k2, k3, k4 = jax.random.split(key, 5)

    # --- case 1: demo shape (S=2, C=32, H=W=16) ------------------------------
    S, C, H, W = 2, 32, 16, 16
    params = init_params(C, kp)
    x_tm = jax.random.normal(k1, (1, S, C, H, W), dtype=jnp.float32)
    x_tr = jax.random.normal(k2, (1, S, C, H, W), dtype=jnp.float32)
    ref = combiner_reference(x_tm, x_tr, params)

    # Exact (f32 MXU) path: tight tolerance against the PyTorch-equivalent ref.
    out_f32 = jax.block_until_ready(
        combiner_pallas(x_tm, x_tr, params, matmul_dtype=jnp.float32))
    assert out_f32.shape == (1, S, C, H, W)
    assert jnp.allclose(out_f32, ref, atol=1e-5, rtol=1e-5)

    # Default fast path (bf16 MXU operands, f32 accumulate / gating).
    out_bf16 = jax.block_until_ready(combiner_pallas(x_tm, x_tr, params))
    assert out_bf16.shape == (1, S, C, H, W)
    assert jnp.allclose(out_bf16, ref, atol=1e-1, rtol=1e-1)

    # --- case 2: ragged spatial size exercising the pad/slice path -----------
    S2, H2, W2 = 3, 15, 13                      # HW = 195 -> padded to 256
    x_tm2 = jax.random.normal(k3, (1, S2, C, H2, W2), dtype=jnp.float32)
    x_tr2 = jax.random.normal(k4, (1, S2, C, H2, W2), dtype=jnp.float32)
    ref2 = combiner_reference(x_tm2, x_tr2, params)
    out2 = jax.block_until_ready(
        combiner_pallas(x_tm2, x_tr2, params, matmul_dtype=jnp.float32))
    assert out2.shape == (1, S2, C, H2, W2)
    assert jnp.allclose(out2, ref2, atol=1e-5, rtol=1e-5)

    print("KERNEL_OK")
</pallas_src>

<mosaic_0001>
module attributes {stable_mosaic.version = 11 : i64} {
  func.func @kernel(%arg0: i32, %arg1: i32, %arg2: memref<1x32x256xf32, #tpu.memory_space<vmem>>, %arg3: memref<1x32x256xf32, #tpu.memory_space<vmem>>, %arg4: memref<2x64x64xf32, #tpu.memory_space<vmem>>, %arg5: memref<1x32x256xf32, #tpu.memory_space<vmem>>) attributes {dimension_semantics = [#tpu.dimension_semantics<parallel>, #tpu.dimension_semantics<parallel>], iteration_bounds = array<i64: 2, 1>, scalar_prefetch = 0 : i64, scratch_operands = 0 : i64, tpu.core_type = #tpu.core_type<tc>, window_params = [{transform_indices = @transform_0, window_bounds = array<i64: 1, 32, 256>}, {transform_indices = @transform_1, window_bounds = array<i64: 1, 32, 256>}, {pipeline_mode = #tpu.pipeline_mode<synchronous>, transform_indices = @transform_2, window_bounds = array<i64: 2, 64, 64>}, {transform_indices = @transform_3, window_bounds = array<i64: 1, 32, 256>}]} {
    %c0 = arith.constant 0 : index
    %c0_0 = arith.constant 0 : index
    %c0_1 = arith.constant 0 : index
    %0 = vector.load %arg2[%c0, %c0_0, %c0_1] : memref<1x32x256xf32, #tpu.memory_space<vmem>>, vector<1x32x256xf32>
    %1 = vector.shape_cast %0 : vector<1x32x256xf32> to vector<32x256xf32>
    %c0_2 = arith.constant 0 : index
    %c0_3 = arith.constant 0 : index
    %c0_4 = arith.constant 0 : index
    %2 = vector.load %arg3[%c0_2, %c0_3, %c0_4] : memref<1x32x256xf32, #tpu.memory_space<vmem>>, vector<1x32x256xf32>
    %3 = vector.shape_cast %2 : vector<1x32x256xf32> to vector<32x256xf32>
    %4 = tpu.concatenate %1, %3 in 0 : vector<32x256xf32>, vector<32x256xf32> -> vector<64x256xf32>
    %c0_5 = arith.constant 0 : index
    %c0_6 = arith.constant 0 : index
    %c0_7 = arith.constant 0 : index
    %5 = vector.load %arg4[%c0_5, %c0_6, %c0_7] : memref<2x64x64xf32, #tpu.memory_space<vmem>>, vector<1x64x64xf32>
    %6 = vector.shape_cast %5 : vector<1x64x64xf32> to vector<64x64xf32>
    %cst = arith.constant dense<0.000000e+00> : vector<64x256xf32>
    %7 = tpu.matmul %6, %4, %cst {dimension_numbers = #tpu.dot_dimension_numbers<[1], [0], [0], [1], [0, 0, 1, 1], [], []>} : vector<64x64xf32>, vector<64x256xf32>, vector<64x256xf32> -> vector<64x256xf32>
    %cst_8 = arith.constant 0.000000e+00 : f32
    %8 = vector.broadcast %cst_8 : f32 to vector<64x256xf32>
    %9 = arith.maximumf %7, %8 : vector<64x256xf32>
    %c1 = arith.constant 1 : index
    %c0_9 = arith.constant 0 : index
    %c0_10 = arith.constant 0 : index
    %10 = vector.load %arg4[%c1, %c0_9, %c0_10] : memref<2x64x64xf32, #tpu.memory_space<vmem>>, vector<1x64x64xf32>
    %11 = vector.shape_cast %10 : vector<1x64x64xf32> to vector<64x64xf32>
    %cst_11 = arith.constant dense<0.000000e+00> : vector<64x256xf32>
    %12 = tpu.matmul %11, %9, %cst_11 {dimension_numbers = #tpu.dot_dimension_numbers<[1], [0], [0], [1], [0, 0, 1, 1], [], []>} : vector<64x64xf32>, vector<64x256xf32>, vector<64x256xf32> -> vector<64x256xf32>
    %13 = arith.negf %12 : vector<64x256xf32>
    %14 = math.exp %13 : vector<64x256xf32>
    %cst_12 = arith.constant 1.000000e+00 : f32
    %15 = vector.broadcast %cst_12 : f32 to vector<64x256xf32>
    %16 = arith.addf %15, %14 : vector<64x256xf32>
    %17 = arith.divf %15, %16 : vector<64x256xf32>
    %18 = vector.extract_strided_slice %17 {offsets = [0, 0], sizes = [32, 256], strides = [1, 1]} : vector<64x256xf32> to vector<32x256xf32>
    %19 = arith.mulf %18, %1 : vector<32x256xf32>
    %20 = vector.extract_strided_slice %17 {offsets = [32, 0], sizes = [32, 256], strides = [1, 1]} : vector<64x256xf32> to vector<32x256xf32>
    %21 = arith.mulf %20, %3 : vector<32x256xf32>
    %22 = arith.addf %19, %21 : vector<32x256xf32>
    %c0_13 = arith.constant 0 : index
    %c0_14 = arith.constant 0 : index
    %c0_15 = arith.constant 0 : index
    %23 = vector.load %arg5[%c0_13, %c0_14, %c0_15] : memref<1x32x256xf32, #tpu.memory_space<vmem>>, vector<1x32x256xf32>
    %24 = vector.shape_cast %23 : vector<1x32x256xf32> to vector<32x256xf32>
    %25 = vector.shape_cast %22 : vector<32x256xf32> to vector<1x32x256xf32>
    tpu.vector_store %arg5[%c0_13, %c0_14, %c0_15], %25 {strides = array<i32>} : memref<1x32x256xf32, #tpu.memory_space<vmem>>, vector<1x32x256xf32>,
    return
  }
  func.func @transform_0(%arg0: i32, %arg1: i32) -> (i32, i32, i32) {
    %c0_i32 = arith.constant 0 : i32
    %c0_i32_0 = arith.constant 0 : i32
    return %arg0, %c0_i32, %arg1 : i32, i32, i32
  }
  func.func @transform_1(%arg0: i32, %arg1: i32) -> (i32, i32, i32) {
    %c0_i32 = arith.constant 0 : i32
    %c0_i32_0 = arith.constant 0 : i32
    return %arg0, %c0_i32, %arg1 : i32, i32, i32
  }
  func.func @transform_2(%arg0: i32, %arg1: i32) -> (i32, i32, i32) {
    %c0_i32 = arith.constant 0 : i32
    %c0_i32_0 = arith.constant 0 : i32
    %c0_i32_1 = arith.constant 0 : i32
    %c0_i32_2 = arith.constant 0 : i32
    return %c0_i32, %c0_i32_0, %c0_i32_1 : i32, i32, i32
  }
  func.func @transform_3(%arg0: i32, %arg1: i32) -> (i32, i32, i32) {
    %c0_i32 = arith.constant 0 : i32
    %c0_i32_0 = arith.constant 0 : i32
    return %arg0, %c0_i32, %arg1 : i32, i32, i32
  }
}

</mosaic_0001>

<llo_original>
// kernel: tpu_custom_call.1
$region0: #{tpu_custom_call.1}
  #allocation0 [shape = 'u32[]', space=smem, size = 0x4, offset = 0x4, fixed_abs, tag = 'smem constant byte address 0x4 - core index']
  #allocation1 [shape = 'u32[72,128]{1,0:T(1,128)}', space=vmem, size = 0x9000, scoped, tag = 'internal scratch']
  %s0 = inlined_call_operand.hbm [shape: f32[2,32,256], index: 0, kind: input, shape index: {}]
  %s1 = inlined_call_operand.hbm [shape: f32[2,32,256], index: 1, kind: input, shape index: {}]
  %s2 = inlined_call_operand.hbm [shape: f32[2,64,64], index: 2, kind: input, shape index: {}]
  %s3 = inlined_call_operand.hbm [shape: f32[2,32,256], index: 3, kind: output, shape index: {}]
  %s4 = sld [smem:[#allocation0]]
  $region57: #{tpu_custom_call.1} parent=0
    _
  %s6 = ssub.s32 1, %s4
  %s7 = scalar_select 0, %s6, %s4
  $region1: #{tpu_custom_call.1} parent=0
    #allocation2 [shape = 'u8[65536]{0}', space=vmem, size = 0x10000, scoped, tag = 'input window, operand 0']
    #allocation3 [shape = 's32[2]{0}', space=sflag, size = 0x8, scoped, tag = 'scoped memory for tpu_custom_call.1']
    #allocation4 [shape = 's32[2]{0}', space=sflag, size = 0x8, scoped, tag = 'scoped memory for tpu_custom_call.1']
    #allocation5 [shape = 'u8[65536]{0}', space=vmem, size = 0x10000, scoped, tag = 'input window, operand 1']
    #allocation6 [shape = 's32[2]{0}', space=sflag, size = 0x8, scoped, tag = 'scoped memory for tpu_custom_call.1']
    #allocation7 [shape = 'u8[65536]{0}', space=vmem, size = 0x10000, scoped, tag = 'input window, operand 2, single buffered']
    #allocation8 [shape = 'u8[65536]{0}', space=vmem, size = 0x10000, scoped, tag = 'output window, operand 0']
    %8 = vsyncpa [#allocation3], 0
    %s9 = scalar_lea.sflag [#allocation3], 1
    %10 = vsyncpa %s9, 0
    %11 = vsyncpa [#allocation6], 0
    %s12 = scalar_lea.sflag [#allocation6], 1
    %13 = vsyncpa %s12, 0
    %14 = vsyncpa [#allocation4], 0
    %s15 = scalar_lea.sflag [#allocation4], 1
    %16 = vsyncpa %s15, 0
    loop: start=0, step=1, limit=4
    $region2: #{tpu_custom_call.1} parent=1 // loop_pre_header
      _
    $region3: #{tpu_custom_call.1} parent=1 // loop_header
      %s18 = sphi 0, %s22
      %p19 = scmp.ge.s32.totalorder %s18, 4
      %s25 = sphi 0, %s37
      %s26 = sphi 0, %s33
      %s27 = sphi 0, %s25
      %s28 = sphi 0, %s26
      %s29 = sphi 0, %s27
      %s30 = sphi 0, %s28
      %s42 = sphi 0, %s44
      %s45 = sphi 0, %s42
      %s46 = sphi 0, %s45
      %s62 = sphi 0, %s46
      %s70 = sphi 0, %s72
      %s73 = sphi 0, %s70
      %s74 = sphi 0, %s73
      %s90 = sphi 0, %s74
      %s94 = sphi 0, %s94
      %s96 = sphi 0, %s94
      %s97 = sphi 0, %s96
      %s111 = sphi 0, %s97
      %s119 = sphi 0, %s121
      %s122 = sphi 0, %s119
      %s123 = sphi 0, %s122
      %s139 = sphi 0, %s123
    $region4: #{tpu_custom_call.1} parent=1 // loop_header_branch
      %21 = sbr.rel (%p19) target = $region8
    $region5: #{tpu_custom_call.1} parent=1 // loop_body
      %s23 = ssub.s32 %s18, 1
      %s24 = ssub.s32 %s18, 2
      %s31 = sadd.s32 1, %s26
      %p32 = scmp.ge.s32.totalorder %s31, 1
      %s33 = scalar_select %p32, 0, %s31
      %s34 = sadd.s32 1, %s25
      %s35 = scalar_select %p32, %s34, %s25
      %p36 = scmp.ge.s32.totalorder %s35, 2
      %s37 = scalar_select %p36, 0, %s35
      %s38 = ssub.s32 %s25, %s37
      %s39 = ssub.s32 %s26, %s33
      %s40 = sor.u32 %s38, %s39
      %p41 = scmp.eq.s32.totalorder %s40, 0
      %s43 = sadd.s32 %s42, 1
      %s44 = scalar_select %p41, %s42, %s43
      %p47 = pneg %p41
      %p48 = scmp.eq.s32.totalorder %s18, 1
      %p49 = por %p47, %p48
      %p50 = scmp.ne.s32.totalorder %s42, %s45
      %p51 = scmp.eq.s32.totalorder %s18, 0
      %p52 = por %p50, %p51
      %p53 = scmp.ne.s32.totalorder %s42, %s45
      %p54 = scmp.eq.s32.totalorder %s23, 1
      %p55 = por %p53, %p54
      %p56 = scmp.ne.s32.totalorder %s45, %s46
      %p57 = scmp.eq.s32.totalorder %s23, 0
      %p58 = por %p56, %p57
      %p59 = scmp.ne.s32.totalorder %s45, %s46
      %p60 = scmp.eq.s32.totalorder %s24, 1
      %p61 = por %p59, %p60
      %p63 = scmp.ne.s32.totalorder %s46, %s62
      %p64 = scmp.eq.s32.totalorder %s24, 0
      %p65 = por %p63, %p64
      %s66 = ssub.s32 %s25, %s37
      %s67 = ssub.s32 %s26, %s33
      %s68 = sor.u32 %s66, %s67
      %p69 = scmp.eq.s32.totalorder %s68, 0
      %s71 = sadd.s32 %s70, 1
      %s72 = scalar_select %p69, %s70, %s71
      %p75 = pneg %p69
      %p76 = scmp.eq.s32.totalorder %s18, 1
      %p77 = por %p75, %p76
      %p78 = scmp.ne.s32.totalorder %s70, %s73
      %p79 = scmp.eq.s32.totalorder %s18, 0
      %p80 = por %p78, %p79
      %p81 = scmp.ne.s32.totalorder %s70, %s73
      %p82 = scmp.eq.s32.totalorder %s23, 1
      %p83 = por %p81, %p82
      %p84 = scmp.ne.s32.totalorder %s73, %s74
      %p85 = scmp.eq.s32.totalorder %s23, 0
      %p86 = por %p84, %p85
      %p87 = scmp.ne.s32.totalorder %s73, %s74
      %p88 = scmp.eq.s32.totalorder %s24, 1
      %p89 = por %p87, %p88
      %p91 = scmp.ne.s32.totalorder %s74, %s90
      %p92 = scmp.eq.s32.totalorder %s24, 0
      %p93 = por %p91, %p92
      %s95 = sadd.s32 %s94, 1
      %p98 = scmp.eq.s32.totalorder %s18, 1
      %p99 = scmp.ne.s32.totalorder %s94, %s96
      %p100 = scmp.eq.s32.totalorder %s18, 0
      %p101 = por %p99, %p100
      %p102 = scmp.ne.s32.totalorder %s94, %s96
      %p103 = scmp.eq.s32.totalorder %s23, 1
      %p104 = por %p102, %p103
      %p105 = scmp.ne.s32.totalorder %s96, %s97
      %p106 = scmp.eq.s32.totalorder %s23, 0
      %p107 = por %p105, %p106
      %p108 = scmp.ne.s32.totalorder %s96, %s97
      %p109 = scmp.eq.s32.totalorder %s24, 1
      %p110 = por %p108, %p109
      %p112 = scmp.ne.s32.totalorder %s97, %s111
      %p113 = scmp.eq.s32.totalorder %s24, 0
      %p114 = por %p112, %p113
      %s115 = ssub.s32 %s25, %s37
      %s116 = ssub.s32 %s26, %s33
      %s117 = sor.u32 %s115, %s116
      %p118 = scmp.eq.s32.totalorder %s117, 0
      %s120 = sadd.s32 %s119, 1
      %s121 = scalar_select %p118, %s119, %s120
      %p124 = pneg %p118
      %p125 = scmp.eq.s32.totalorder %s18, 1
      %p126 = por %p124, %p125
      %p127 = scmp.ne.s32.totalorder %s119, %s122
      %p128 = scmp.eq.s32.totalorder %s18, 0
      %p129 = por %p127, %p128
      %p130 = scmp.ne.s32.totalorder %s119, %s122
      %p131 = scmp.eq.s32.totalorder %s23, 1
      %p132 = por %p130, %p131
      %p133 = scmp.ne.s32.totalorder %s122, %s123
      %p134 = scmp.eq.s32.totalorder %s23, 0
      %p135 = por %p133, %p134
      %p136 = scmp.ne.s32.totalorder %s122, %s123
      %p137 = scmp.eq.s32.totalorder %s24, 1
      %p138 = por %p136, %p137
      %p140 = scmp.ne.s32.totalorder %s123, %s139
      %p141 = scmp.eq.s32.totalorder %s24, 0
      %p142 = por %p140, %p141
      %p143 = scmp.le.s32.totalorder 1, %s18
      %p144 = scmp.lt.s32.totalorder %s18, 3
      %p145 = pnand %p143, %p144
      %p146 = pneg %p145
      // Predicated region
      $region9: #{tpu_custom_call.1} parent=5 // pred_check
        _
      $region10: #{tpu_custom_call.1} parent=5 // pred_check_branch
        %148 = sbr.rel (%p145) target = $region12
      $region11: #{tpu_custom_call.1} parent=5 // pred_region
        %s149 = ssub.s32 %s18, 1
        // Predicated region
        $region13: #{tpu_custom_call.1} parent=11 // pred_check
          %p150 = pneg %p107
        $region14: #{tpu_custom_call.1} parent=11 // pred_check_branch
          %152 = sbr.rel (%p150) target = $region16
        $region15: #{tpu_custom_call.1} parent=11 // pred_region
          %154 = vsyncadd [#allocation6], 0
          %s155 = sshll.u32 %s2, 4
          %s156 = int_to_ptr.hbm [resolvable:$true] %s155
          %s157 = sshll.u32 [#allocation7], 4
          %s158 = int_to_ptr.vmem [resolvable:$true] %s157
          %163 = dma.hbm_to_vmem [thread:$0]  %s156, 2048, %s158, [#allocation6], 128, 128, 8
        $region16: #{tpu_custom_call.1} parent=11 // pred_fallthru
          _
      $region12: #{tpu_custom_call.1} parent=5 // pred_fallthru
        _
      %p164 = scmp.lt.s32.totalorder %s18, 2
      // Predicated region
      $region17: #{tpu_custom_call.1} parent=5 // pred_check
        %p165 = pneg %p164
      $region18: #{tpu_custom_call.1} parent=5 // pred_check_branch
        %167 = sbr.rel (%p165) target = $region20
      $region19: #{tpu_custom_call.1} parent=5 // pred_region
        // Predicated region
        $region21: #{tpu_custom_call.1} parent=19 // pred_check
          %p168 = pneg %p52
        $region22: #{tpu_custom_call.1} parent=19 // pred_check_branch
          %170 = sbr.rel (%p168) target = $region24
        $region23: #{tpu_custom_call.1} parent=19 // pred_region
          %s171 = sand.u32 %s42, 1
          %s172 = scalar_lea.sflag [#allocation3], %s171
          %s173 = sand.u32 %s42, 1
          %s174 = smul.addr %s173, 64
          %s175 = scalar_lea.vmem [#allocation2], %s174
          %s176 = smul.u32 2, %s26
          %178 = vsyncadd %s172, 0
          %s179 = smul.addr %s25, 8
          %s180 = sadd.s32 %s176, %s179
          %s181 = smul.addr %s180, 8
          %s182 = scalar_lea.hbm %s0, %s181
          %s183 = sshll.u32 %s182, 4
          %s184 = int_to_ptr.hbm [resolvable:$true] %s183
          %s185 = sshll.u32 %s175, 4
          %s186 = int_to_ptr.vmem [resolvable:$true] %s185
          %191 = dma.hbm_to_vmem [thread:$0]  %s184, 1024, %s186, %s172, 256, 256, 16
        $region24: #{tpu_custom_call.1} parent=19 // pred_fallthru
          _
        // Predicated region
        $region25: #{tpu_custom_call.1} parent=19 // pred_check
          %p192 = pneg %p80
        $region26: #{tpu_custom_call.1} parent=19 // pred_check_branch
          %194 = sbr.rel (%p192) target = $region28
        $region27: #{tpu_custom_call.1} parent=19 // pred_region
          %s195 = sand.u32 %s18, 1
          %s196 = scalar_lea.sflag [#allocation6], %s195
          %s197 = sand.u32 %s70, 1
          %s198 = smul.addr %s197, 64
          %s199 = scalar_lea.vmem [#allocation5], %s198
          %s200 = smul.u32 2, %s26
          %202 = vsyncadd %s196, 0
          %s203 = smul.addr %s25, 8
          %s204 = sadd.s32 %s200, %s203
          %s205 = smul.addr %s204, 8
          %s206 = scalar_lea.hbm %s1, %s205
          %s207 = sshll.u32 %s206, 4
          %s208 = int_to_ptr.hbm [resolvable:$true] %s207
          %s209 = sshll.u32 %s199, 4
          %s210 = int_to_ptr.vmem [resolvable:$true] %s209
          %215 = dma.hbm_to_vmem [thread:$0]  %s208, 1024, %s210, %s196, 256, 256, 16
        $region28: #{tpu_custom_call.1} parent=19 // pred_fallthru
          _
      $region20: #{tpu_custom_call.1} parent=5 // pred_fallthru
        _
      %p216 = scmp.le.s32.totalorder 1, %s18
      %p217 = scmp.lt.s32.totalorder %s18, 3
      %p218 = pnand %p216, %p217
      %p219 = pneg %p218
      // Predicated region
      $region29: #{tpu_custom_call.1} parent=5 // pred_check
        _
      $region30: #{tpu_custom_call.1} parent=5 // pred_check_branch
        %221 = sbr.rel (%p218) target = $region32
      $region31: #{tpu_custom_call.1} parent=5 // pred_region
        %s222 = ssub.s32 %s18, 1
        %s223 = sand.u32 %s45, 1
        %s224 = scalar_lea.sflag [#allocation3], %s223
        %s225 = sand.u32 %s45, 1
        %s226 = smul.addr %s225, 64
        %s227 = scalar_lea.vmem [#allocation2], %s226
        // Predicated region
        $region33: #{tpu_custom_call.1} parent=31 // pred_check
          %p228 = pneg %p58
        $region34: #{tpu_custom_call.1} parent=31 // pred_check_branch
          %230 = sbr.rel (%p228) target = $region36
        $region35: #{tpu_custom_call.1} parent=31 // pred_region
          %232 = dma.done %s224, 1024
        $region36: #{tpu_custom_call.1} parent=31 // pred_fallthru
          _
        %s233 = sand.u32 %s23, 1
        %s234 = scalar_lea.sflag [#allocation6], %s233
        %s235 = sand.u32 %s73, 1
        %s236 = smul.addr %s235, 64
        %s237 = scalar_lea.vmem [#allocation5], %s236
        // Predicated region
        $region37: #{tpu_custom_call.1} parent=31 // pred_check
          %p238 = pneg %p86
        $region38: #{tpu_custom_call.1} parent=31 // pred_check_branch
          %240 = sbr.rel (%p238) target = $region40
        $region39: #{tpu_custom_call.1} parent=31 // pred_region
          %242 = dma.done %s234, 1024
        $region40: #{tpu_custom_call.1} parent=31 // pred_fallthru
          _
        // Predicated region
        $region41: #{tpu_custom_call.1} parent=31 // pred_check
          %p243 = pneg %p107
        $region42: #{tpu_custom_call.1} parent=31 // pred_check_branch
          %245 = sbr.rel (%p243) target = $region44
        $region43: #{tpu_custom_call.1} parent=31 // pred_region
          %247 = dma.done [#allocation6], 2048
        $region44: #{tpu_custom_call.1} parent=31 // pred_fallthru
          _
        %s248 = sand.u32 %s45, 1
        %s249 = scalar_lea.sflag [#allocation3], %s248
        %s250 = sand.u32 %s45, 1
        %s251 = smul.addr %s250, 64
        %s252 = scalar_lea.vmem [#allocation2], %s251
        %p253 = pneg %p58
        %p254 = pneg %p55
        %s255 = sand.u32 %s23, 1
        %s256 = scalar_lea.sflag [#allocation6], %s255
        %s257 = sand.u32 %s73, 1
        %s258 = smul.addr %s257, 64
        %s259 = scalar_lea.vmem [#allocation5], %s258
        %p260 = pneg %p86
        %p261 = pneg %p83
        %p262 = pneg %p107
        %p263 = pneg %p104
        %p264 = pneg %p135
        %p265 = pneg %p132
        %s266 = sand.u32 %s122, 1
        %s267 = scalar_lea.sflag [#allocation4], %s266
        %s268 = sand.u32 %s122, 1
        %s269 = smul.addr %s268, 64
        %s270 = scalar_lea.vmem [#allocation8], %s269
        %s271 = smul.u32 2, %s28
        %s272 = smul.u32 2, %s28
        %s273 = smul.u32 2, %s28
        %v274 = vld [vmem:[%s227] sm:$0xff]
        %v275 = vld [vmem:[%s227 + $0x8] sm:$0xff]
        %v276 = vld [vmem:[%s227 + $0x10] sm:$0xff]
        %v277 = vld [vmem:[%s227 + $0x18] sm:$0xff]
        %v278 = vld [vmem:[%s227 + $0x20] sm:$0xff]
        %v279 = vld [vmem:[%s227 + $0x28] sm:$0xff]
        %v280 = vld [vmem:[%s227 + $0x30] sm:$0xff]
        %v281 = vld [vmem:[%s227 + $0x38] sm:$0xff]
        %v282 = vld [vmem:[%s237] sm:$0xff]
        %v283 = vld [vmem:[%s237 + $0x8] sm:$0xff]
        %v284 = vld [vmem:[%s237 + $0x10] sm:$0xff]
        %v285 = vld [vmem:[%s237 + $0x18] sm:$0xff]
        %v286 = vld [vmem:[%s237 + $0x20] sm:$0xff]
        %v287 = vld [vmem:[%s237 + $0x28] sm:$0xff]
        %v288 = vld [vmem:[%s237 + $0x30] sm:$0xff]
        %v289 = vld [vmem:[%s237 + $0x38] sm:$0xff]
        %v290 = vld [vmem:[#allocation7] sm:$0xff]
        %v291 = vld [vmem:[#allocation7 + $0x8] sm:$0xff]
        %v292 = vld [vmem:[#allocation7 + $0x10] sm:$0xff]
        %v293 = vld [vmem:[#allocation7 + $0x18] sm:$0xff]
        %v294 = vld [vmem:[#allocation7 + $0x20] sm:$0xff]
        %v295 = vld [vmem:[#allocation7 + $0x28] sm:$0xff]
        %v296 = vld [vmem:[#allocation7 + $0x30] sm:$0xff]
        %v297 = vld [vmem:[#allocation7 + $0x38] sm:$0xff]
        %vm298 = vcmask 523264
        %v300 = vsel %vm298, %v290, 0
        %v303 = vsel %vm298, %v291, 0
        %v306 = vsel %vm298, %v292, 0
        %v309 = vsel %vm298, %v293, 0
        %v312 = vsel %vm298, %v294, 0
        %v315 = vsel %vm298, %v295, 0
        %v318 = vsel %vm298, %v296, 0
        %v321 = vsel %vm298, %v297, 0
        %323 = vmatpush.msra.mxu0 0.0
        %324 = vmatpush.msra.mxu0 0.0
        %325 = vmatpush.msra.mxu0 0.0
        %326 = vmatpush.msra.mxu0 0.0
        %327 = vmatpush.msra.mxu0 0.0
        %328 = vmatpush.msra.mxu0 0.0
        %329 = vmatpush.msra.mxu0 0.0
        %330 = vmatpush.msra.mxu0 0.0
        %331 = vmatpush.msra.mxu0 %v288
        %332 = vmatpush.msra.mxu0 %v286
        %333 = vmatpush.msra.mxu0 %v284
        %334 = vmatpush.msra.mxu0 %v282
        %335 = vmatpush.msra.mxu0 %v280
        %336 = vmatpush.msra.mxu0 %v278
        %337 = vmatpush.msra.mxu0 %v276
        %338 = vmatpush.msra.mxu0 %v274
        %339 = vmatmul.f32.gmra.mxu0 %v300
        %v340 = vpop.f32.mrf.mxu0
        %v341 = vadd.f32 0.0, %v340
        %342 = vmatmul.f32.gmra.mxu0 %v303
        %v343 = vpop.f32.mrf.mxu0
        %v344 = vadd.f32 0.0, %v343
        %345 = vmatmul.f32.gmra.mxu0 %v306
        %v346 = vpop.f32.mrf.mxu0
        %v347 = vadd.f32 0.0, %v346
        %348 = vmatmul.f32.gmra.mxu0 %v309
        %v349 = vpop.f32.mrf.mxu0
        %v350 = vadd.f32 0.0, %v349
        %351 = vmatmul.f32.gmra.mxu0 %v312
        %v352 = vpop.f32.mrf.mxu0
        %v353 = vadd.f32 0.0, %v352
        %354 = vmatmul.f32.gmra.mxu0 %v315
        %v355 = vpop.f32.mrf.mxu0
        %v356 = vadd.f32 0.0, %v355
        %357 = vmatmul.f32.gmra.mxu0 %v318
        %v358 = vpop.f32.mrf.mxu0
        %v359 = vadd.f32 0.0, %v358
        %360 = vmatmul.f32.gmra.mxu0 %v321
        %v361 = vpop.f32.mrf.mxu0
        %v362 = vadd.f32 0.0, %v361
        %363 = vdwg.mxu0
        %364 = vmatpush.msra.mxu0 0.0
        %365 = vmatpush.msra.mxu0 0.0
        %366 = vmatpush.msra.mxu0 0.0
        %367 = vmatpush.msra.mxu0 0.0
        %368 = vmatpush.msra.mxu0 0.0
        %369 = vmatpush.msra.mxu0 0.0
        %370 = vmatpush.msra.mxu0 0.0
        %371 = vmatpush.msra.mxu0 0.0
        %372 = vmatpush.msra.mxu0 %v289
        %373 = vmatpush.msra.mxu0 %v287
        %374 = vmatpush.msra.mxu0 %v285
        %375 = vmatpush.msra.mxu0 %v283
        %376 = vmatpush.msra.mxu0 %v281
        %377 = vmatpush.msra.mxu0 %v279
        %378 = vmatpush.msra.mxu0 %v277
        %379 = vmatpush.msra.mxu0 %v275
        %380 = vmatmul.f32.gmra.mxu0 %v300
        %v381 = vpop.f32.mrf.mxu0
        %v382 = vadd.f32 0.0, %v381
        %383 = vmatmul.f32.gmra.mxu0 %v303
        %v384 = vpop.f32.mrf.mxu0
        %v385 = vadd.f32 0.0, %v384
        %386 = vmatmul.f32.gmra.mxu0 %v306
        %v387 = vpop.f32.mrf.mxu0
        %v388 = vadd.f32 0.0, %v387
        %389 = vmatmul.f32.gmra.mxu0 %v309
        %v390 = vpop.f32.mrf.mxu0
        %v391 = vadd.f32 0.0, %v390
        %392 = vmatmul.f32.gmra.mxu0 %v312
        %v393 = vpop.f32.mrf.mxu0
        %v394 = vadd.f32 0.0, %v393
        %395 = vmatmul.f32.gmra.mxu0 %v315
        %v396 = vpop.f32.mrf.mxu0
        %v397 = vadd.f32 0.0, %v396
        %398 = vmatmul.f32.gmra.mxu0 %v318
        %v399 = vpop.f32.mrf.mxu0
        %v400 = vadd.f32 0.0, %v399
        %401 = vmatmul.f32.gmra.mxu0 %v321
        %v402 = vpop.f32.mrf.mxu0
        %v403 = vadd.f32 0.0, %v402
        %404 = vdwg.mxu0
        %v405 = vmax.f32 %v341, 0.0
        %v406 = vmax.f32 %v382, 0.0
        %v407 = vmax.f32 %v344, 0.0
        %v408 = vmax.f32 %v385, 0.0
        %v409 = vmax.f32 %v347, 0.0
        %v410 = vmax.f32 %v388, 0.0
        %v411 = vmax.f32 %v350, 0.0
        %v412 = vmax.f32 %v391, 0.0
        %v413 = vmax.f32 %v353, 0.0
        %v414 = vmax.f32 %v394, 0.0
        %v415 = vmax.f32 %v356, 0.0
        %v416 = vmax.f32 %v397, 0.0
        %v417 = vmax.f32 %v359, 0.0
        %v418 = vmax.f32 %v400, 0.0
        %v419 = vmax.f32 %v362, 0.0
        %v420 = vmax.f32 %v403, 0.0
        %s421 = scalar_lea.vmem [#allocation7], 64
        %v422 = vld [vmem:[%s421] sm:$0xff]
        %v423 = vld [vmem:[%s421 + $0x8] sm:$0xff]
        %v424 = vld [vmem:[%s421 + $0x10] sm:$0xff]
        %v425 = vld [vmem:[%s421 + $0x18] sm:$0xff]
        %v426 = vld [vmem:[%s421 + $0x20] sm:$0xff]
        %v427 = vld [vmem:[%s421 + $0x28] sm:$0xff]
        %v428 = vld [vmem:[%s421 + $0x30] sm:$0xff]
        %v429 = vld [vmem:[%s421 + $0x38] sm:$0xff]
        %v431 = vsel %vm298, %v422, 0
        %v434 = vsel %vm298, %v423, 0
        %v437 = vsel %vm298, %v424, 0
        %v440 = vsel %vm298, %v425, 0
        %v443 = vsel %vm298, %v426, 0
        %v446 = vsel %vm298, %v427, 0
        %v449 = vsel %vm298, %v428, 0
        %v452 = vsel %vm298, %v429, 0
        %454 = vmatpush.msra.mxu0 0.0
        %455 = vmatpush.msra.mxu0 0.0
        %456 = vmatpush.msra.mxu0 0.0
        %457 = vmatpush.msra.mxu0 0.0
        %458 = vmatpush.msra.mxu0 0.0
        %459 = vmatpush.msra.mxu0 0.0
        %460 = vmatpush.msra.mxu0 0.0
        %461 = vmatpush.msra.mxu0 0.0
        %462 = vmatpush.msra.mxu0 %v419
        %463 = vmatpush.msra.mxu0 %v417
        %464 = vmatpush.msra.mxu0 %v415
        %465 = vmatpush.msra.mxu0 %v413
        %466 = vmatpush.msra.mxu0 %v411
        %467 = vmatpush.msra.mxu0 %v409
        %468 = vmatpush.msra.mxu0 %v407
        %469 = vmatpush.msra.mxu0 %v405
        %470 = vmatmul.f32.gmra.mxu0 %v431
        %v471 = vpop.f32.mrf.mxu0
        %v472 = vadd.f32 0.0, %v471
        %473 = vmatmul.f32.gmra.mxu0 %v434
        %v474 = vpop.f32.mrf.mxu0
        %v475 = vadd.f32 0.0, %v474
        %476 = vmatmul.f32.gmra.mxu0 %v437
        %v477 = vpop.f32.mrf.mxu0
        %v478 = vadd.f32 0.0, %v477
        %479 = vmatmul.f32.gmra.mxu0 %v440
        %v480 = vpop.f32.mrf.mxu0
        %v481 = vadd.f32 0.0, %v480
        %482 = vmatmul.f32.gmra.mxu0 %v443
        %v483 = vpop.f32.mrf.mxu0
        %v484 = vadd.f32 0.0, %v483
        %485 = vmatmul.f32.gmra.mxu0 %v446
        %v486 = vpop.f32.mrf.mxu0
        %v487 = vadd.f32 0.0, %v486
        %488 = vmatmul.f32.gmra.mxu0 %v449
        %v489 = vpop.f32.mrf.mxu0
        %v490 = vadd.f32 0.0, %v489
        %491 = vmatmul.f32.gmra.mxu0 %v452
        %v492 = vpop.f32.mrf.mxu0
        %v493 = vadd.f32 0.0, %v492
        %494 = vdwg.mxu0
        %495 = vmatpush.msra.mxu0 0.0
        %496 = vmatpush.msra.mxu0 0.0
        %497 = vmatpush.msra.mxu0 0.0
        %498 = vmatpush.msra.mxu0 0.0
        %499 = vmatpush.msra.mxu0 0.0
        %500 = vmatpush.msra.mxu0 0.0
        %501 = vmatpush.msra.mxu0 0.0
        %502 = vmatpush.msra.mxu0 0.0
        %503 = vmatpush.msra.mxu0 %v420
        %504 = vmatpush.msra.mxu0 %v418
        %505 = vmatpush.msra.mxu0 %v416
        %506 = vmatpush.msra.mxu0 %v414
        %507 = vmatpush.msra.mxu0 %v412
        %508 = vmatpush.msra.mxu0 %v410
        %509 = vmatpush.msra.mxu0 %v408
        %510 = vmatpush.msra.mxu0 %v406
        %511 = vmatmul.f32.gmra.mxu0 %v431
        %v512 = vpop.f32.mrf.mxu0
        %v513 = vadd.f32 0.0, %v512
        %514 = vmatmul.f32.gmra.mxu0 %v434
        %v515 = vpop.f32.mrf.mxu0
        %v516 = vadd.f32 0.0, %v515
        %517 = vmatmul.f32.gmra.mxu0 %v437
        %v518 = vpop.f32.mrf.mxu0
        %v519 = vadd.f32 0.0, %v518
        %520 = vmatmul.f32.gmra.mxu0 %v440
        %v521 = vpop.f32.mrf.mxu0
        %v522 = vadd.f32 0.0, %v521
        %523 = vmatmul.f32.gmra.mxu0 %v443
        %v524 = vpop.f32.mrf.mxu0
        %v525 = vadd.f32 0.0, %v524
        %526 = vmatmul.f32.gmra.mxu0 %v446
        %v527 = vpop.f32.mrf.mxu0
        %v528 = vadd.f32 0.0, %v527
        %529 = vmatmul.f32.gmra.mxu0 %v449
        %v530 = vpop.f32.mrf.mxu0
        %v531 = vadd.f32 0.0, %v530
        %532 = vmatmul.f32.gmra.mxu0 %v452
        %v533 = vpop.f32.mrf.mxu0
        %v534 = vadd.f32 0.0, %v533
        %535 = vdwg.mxu0
        %v536 = vxor.u32 %v472, 2147483648
        %v537 = vxor.u32 %v513, 2147483648
        %v538 = vxor.u32 %v475, 2147483648
        %v539 = vxor.u32 %v516, 2147483648
        %v540 = vxor.u32 %v478, 2147483648
        %v541 = vxor.u32 %v519, 2147483648
        %v542 = vxor.u32 %v481, 2147483648
        %v543 = vxor.u32 %v522, 2147483648
        %v544 = vxor.u32 %v484, 2147483648
        %v545 = vxor.u32 %v525, 2147483648
        %v546 = vxor.u32 %v487, 2147483648
        %v547 = vxor.u32 %v528, 2147483648
        %v548 = vxor.u32 %v490, 2147483648
        %v549 = vxor.u32 %v531, 2147483648
        %v550 = vxor.u32 %v493, 2147483648
        %v551 = vxor.u32 %v534, 2147483648
        %v552 = vmul.f32 %v536, 1.442695
        %v553 = vpow.pop %v552
        %v554 = vmul.f32 %v537, 1.442695
        %v555 = vpow.pop %v554
        %v556 = vmul.f32 %v538, 1.442695
        %v557 = vpow.pop %v556
        %v558 = vmul.f32 %v539, 1.442695
        %v559 = vpow.pop %v558
        %v560 = vmul.f32 %v540, 1.442695
        %v561 = vpow.pop %v560
        %v562 = vmul.f32 %v541, 1.442695
        %v563 = vpow.pop %v562
        %v564 = vmul.f32 %v542, 1.442695
        %v565 = vpow.pop %v564
        %v566 = vmul.f32 %v543, 1.442695
        %v567 = vpow.pop %v566
        %v568 = vmul.f32 %v544, 1.442695
        %v569 = vpow.pop %v568
        %v570 = vmul.f32 %v545, 1.442695
        %v571 = vpow.pop %v570
        %v572 = vmul.f32 %v546, 1.442695
        %v573 = vpow.pop %v572
        %v574 = vmul.f32 %v547, 1.442695
        %v575 = vpow.pop %v574
        %v576 = vmul.f32 %v548, 1.442695
        %v577 = vpow.pop %v576
        %v578 = vmul.f32 %v549, 1.442695
        %v579 = vpow.pop %v578
        %v580 = vmul.f32 %v550, 1.442695
        %v581 = vpow.pop %v580
        %v582 = vmul.f32 %v551, 1.442695
        %v583 = vpow.pop %v582
        %v584 = vadd.f32 %v553, 1.0
        %v585 = vadd.f32 %v555, 1.0
        %v586 = vadd.f32 %v557, 1.0
        %v587 = vadd.f32 %v559, 1.0
        %v588 = vadd.f32 %v561, 1.0
        %v589 = vadd.f32 %v563, 1.0
        %v590 = vadd.f32 %v565, 1.0
        %v591 = vadd.f32 %v567, 1.0
        %v592 = vadd.f32 %v569, 1.0
        %v593 = vadd.f32 %v571, 1.0
        %v594 = vadd.f32 %v573, 1.0
        %v595 = vadd.f32 %v575, 1.0
        %v596 = vadd.f32 %v577, 1.0
        %v597 = vadd.f32 %v579, 1.0
        %v598 = vadd.f32 %v581, 1.0
        %v599 = vadd.f32 %v583, 1.0
        %v600 = vrcp.pop %v584
        %v601 = vmul.f32 %v584, %v600
        %v602 = vsub.f32 1.0, %v601
        %v603 = vmul.f32 %v600, %v602
        %v604 = vadd.f32 %v600, %v603
        %vm605 = vweird.f32 %v584
        %vm606 = vweird.f32 %v600
        %vm607 = vmor %vm605, %vm606
        %v608 = vsel %vm607, %v600, %v604
        %v609 = vand.u32 2147483647, %v584
        %vm610 = vcmp.eq.f32.partialorder %v609, 8.507059e+37
        %v611 = vand.u32 %v584, 2147483648
        %v612 = vor.u32 1.1754944e-38, %v611
        %v613 = vsel %vm610, %v612, %v608
        %v614 = vmul.f32 1.0, %v613
        %v615 = vrcp.pop %v585
        %v616 = vmul.f32 %v585, %v615
        %v617 = vsub.f32 1.0, %v616
        %v618 = vmul.f32 %v615, %v617
        %v619 = vadd.f32 %v615, %v618
        %vm620 = vweird.f32 %v585
        %vm621 = vweird.f32 %v615
        %vm622 = vmor %vm620, %vm621
        %v623 = vsel %vm622, %v615, %v619
        %v624 = vand.u32 2147483647, %v585
        %vm625 = vcmp.eq.f32.partialorder %v624, 8.507059e+37
        %v626 = vand.u32 %v585, 2147483648
        %v627 = vor.u32 1.1754944e-38, %v626
        %v628 = vsel %vm625, %v627, %v623
        %v629 = vmul.f32 1.0, %v628
        %v630 = vrcp.pop %v586
        %v631 = vmul.f32 %v586, %v630
        %v632 = vsub.f32 1.0, %v631
        %v633 = vmul.f32 %v630, %v632
        %v634 = vadd.f32 %v630, %v633
        %vm635 = vweird.f32 %v586
        %vm636 = vweird.f32 %v630
        %vm637 = vmor %vm635, %vm636
        %v638 = vsel %vm637, %v630, %v634
        %v639 = vand.u32 2147483647, %v586
        %vm640 = vcmp.eq.f32.partialorder %v639, 8.507059e+37
        %v641 = vand.u32 %v586, 2147483648
        %v642 = vor.u32 1.1754944e-38, %v641
        %v643 = vsel %vm640, %v642, %v638
        %v644 = vmul.f32 1.0, %v643
        %v645 = vrcp.pop %v587
        %v646 = vmul.f32 %v587, %v645
        %v647 = vsub.f32 1.0, %v646
        %v648 = vmul.f32 %v645, %v647
        %v649 = vadd.f32 %v645, %v648
        %vm650 = vweird.f32 %v587
        %vm651 = vweird.f32 %v645
        %vm652 = vmor %vm650, %vm651
        %v653 = vsel %vm652, %v645, %v649
        %v654 = vand.u32 2147483647, %v587
        %vm655 = vcmp.eq.f32.partialorder %v654, 8.507059e+37
        %v656 = vand.u32 %v587, 2147483648
        %v657 = vor.u32 1.1754944e-38, %v656
        %v658 = vsel %vm655, %v657, %v653
        %v659 = vmul.f32 1.0, %v658
        %v660 = vrcp.pop %v588
        %v661 = vmul.f32 %v588, %v660
        %v662 = vsub.f32 1.0, %v661
        %v663 = vmul.f32 %v660, %v662
        %v664 = vadd.f32 %v660, %v663
        %vm665 = vweird.f32 %v588
        %vm666 = vweird.f32 %v660
        %vm667 = vmor %vm665, %vm666
        %v668 = vsel %vm667, %v660, %v664
        %v669 = vand.u32 2147483647, %v588
        %vm670 = vcmp.eq.f32.partialorder %v669, 8.507059e+37
        %v671 = vand.u32 %v588, 2147483648
        %v672 = vor.u32 1.1754944e-38, %v671
        %v673 = vsel %vm670, %v672, %v668
        %v674 = vmul.f32 1.0, %v673
        %v675 = vrcp.pop %v589
        %v676 = vmul.f32 %v589, %v675
        %v677 = vsub.f32 1.0, %v676
        %v678 = vmul.f32 %v675, %v677
        %v679 = vadd.f32 %v675, %v678
        %vm680 = vweird.f32 %v589
        %vm681 = vweird.f32 %v675
        %vm682 = vmor %vm680, %vm681
        %v683 = vsel %vm682, %v675, %v679
        %v684 = vand.u32 2147483647, %v589
        %vm685 = vcmp.eq.f32.partialorder %v684, 8.507059e+37
        %v686 = vand.u32 %v589, 2147483648
        %v687 = vor.u32 1.1754944e-38, %v686
        %v688 = vsel %vm685, %v687, %v683
        %v689 = vmul.f32 1.0, %v688
        %v690 = vrcp.pop %v590
        %v691 = vmul.f32 %v590, %v690
        %v692 = vsub.f32 1.0, %v691
        %v693 = vmul.f32 %v690, %v692
        %v694 = vadd.f32 %v690, %v693
        %vm695 = vweird.f32 %v590
        %vm696 = vweird.f32 %v690
        %vm697 = vmor %vm695, %vm696
        %v698 = vsel %vm697, %v690, %v694
        %v699 = vand.u32 2147483647, %v590
        %vm700 = vcmp.eq.f32.partialorder %v699, 8.507059e+37
        %v701 = vand.u32 %v590, 2147483648
        %v702 = vor.u32 1.1754944e-38, %v701
        %v703 = vsel %vm700, %v702, %v698
        %v704 = vmul.f32 1.0, %v703
        %v705 = vrcp.pop %v591
        %v706 = vmul.f32 %v591, %v705
        %v707 = vsub.f32 1.0, %v706
        %v708 = vmul.f32 %v705, %v707
        %v709 = vadd.f32 %v705, %v708
        %vm710 = vweird.f32 %v591
        %vm711 = vweird.f32 %v705
        %vm712 = vmor %vm710, %vm711
        %v713 = vsel %vm712, %v705, %v709
        %v714 = vand.u32 2147483647, %v591
        %vm715 = vcmp.eq.f32.partialorder %v714, 8.507059e+37
        %v716 = vand.u32 %v591, 2147483648
        %v717 = vor.u32 1.1754944e-38, %v716
        %v718 = vsel %vm715, %v717, %v713
        %v719 = vmul.f32 1.0, %v718
        %v720 = vrcp.pop %v592
        %v721 = vmul.f32 %v592, %v720
        %v722 = vsub.f32 1.0, %v721
        %v723 = vmul.f32 %v720, %v722
        %v724 = vadd.f32 %v720, %v723
        %vm725 = vweird.f32 %v592
        %vm726 = vweird.f32 %v720
        %vm727 = vmor %vm725, %vm726
        %v728 = vsel %vm727, %v720, %v724
        %v729 = vand.u32 2147483647, %v592
        %vm730 = vcmp.eq.f32.partialorder %v729, 8.507059e+37
        %v731 = vand.u32 %v592, 2147483648
        %v732 = vor.u32 1.1754944e-38, %v731
        %v733 = vsel %vm730, %v732, %v728
        %v734 = vmul.f32 1.0, %v733
        %v735 = vrcp.pop %v593
        %v736 = vmul.f32 %v593, %v735
        %v737 = vsub.f32 1.0, %v736
        %v738 = vmul.f32 %v735, %v737
        %v739 = vadd.f32 %v735, %v738
        %vm740 = vweird.f32 %v593
        %vm741 = vweird.f32 %v735
        %vm742 = vmor %vm740, %vm741
        %v743 = vsel %vm742, %v735, %v739
        %v744 = vand.u32 2147483647, %v593
        %vm745 = vcmp.eq.f32.partialorder %v744, 8.507059e+37
        %v746 = vand.u32 %v593, 2147483648
        %v747 = vor.u32 1.1754944e-38, %v746
        %v748 = vsel %vm745, %v747, %v743
        %v749 = vmul.f32 1.0, %v748
        %v750 = vrcp.pop %v594
        %v751 = vmul.f32 %v594, %v750
        %v752 = vsub.f32 1.0, %v751
        %v753 = vmul.f32 %v750, %v752
        %v754 = vadd.f32 %v750, %v753
        %vm755 = vweird.f32 %v594
        %vm756 = vweird.f32 %v750
        %vm757 = vmor %vm755, %vm756
        %v758 = vsel %vm757, %v750, %v754
        %v759 = vand.u32 2147483647, %v594
        %vm760 = vcmp.eq.f32.partialorder %v759, 8.507059e+37
        %v761 = vand.u32 %v594, 2147483648
        %v762 = vor.u32 1.1754944e-38, %v761
        %v763 = vsel %vm760, %v762, %v758
        %v764 = vmul.f32 1.0, %v763
        %v765 = vrcp.pop %v595
        %v766 = vmul.f32 %v595, %v765
        %v767 = vsub.f32 1.0, %v766
        %v768 = vmul.f32 %v765, %v767
        %v769 = vadd.f32 %v765, %v768
        %vm770 = vweird.f32 %v595
        %vm771 = vweird.f32 %v765
        %vm772 = vmor %vm770, %vm771
        %v773 = vsel %vm772, %v765, %v769
        %v774 = vand.u32 2147483647, %v595
        %vm775 = vcmp.eq.f32.partialorder %v774, 8.507059e+37
        %v776 = vand.u32 %v595, 2147483648
        %v777 = vor.u32 1.1754944e-38, %v776
        %v778 = vsel %vm775, %v777, %v773
        %v779 = vmul.f32 1.0, %v778
        %v780 = vrcp.pop %v596
        %v781 = vmul.f32 %v596, %v780
        %v782 = vsub.f32 1.0, %v781
        %v783 = vmul.f32 %v780, %v782
        %v784 = vadd.f32 %v780, %v783
        %vm785 = vweird.f32 %v596
        %vm786 = vweird.f32 %v780
        %vm787 = vmor %vm785, %vm786
        %v788 = vsel %vm787, %v780, %v784
        %v789 = vand.u32 2147483647, %v596
        %vm790 = vcmp.eq.f32.partialorder %v789, 8.507059e+37
        %v791 = vand.u32 %v596, 2147483648
        %v792 = vor.u32 1.1754944e-38, %v791
        %v793 = vsel %vm790, %v792, %v788
        %v794 = vmul.f32 1.0, %v793
        %v795 = vrcp.pop %v597
        %v796 = vmul.f32 %v597, %v795
        %v797 = vsub.f32 1.0, %v796
        %v798 = vmul.f32 %v795, %v797
        %v799 = vadd.f32 %v795, %v798
        %vm800 = vweird.f32 %v597
        %vm801 = vweird.f32 %v795
        %vm802 = vmor %vm800, %vm801
        %v803 = vsel %vm802, %v795, %v799
        %v804 = vand.u32 2147483647, %v597
        %vm805 = vcmp.eq.f32.partialorder %v804, 8.507059e+37
        %v806 = vand.u32 %v597, 2147483648
        %v807 = vor.u32 1.1754944e-38, %v806
        %v808 = vsel %vm805, %v807, %v803
        %v809 = vmul.f32 1.0, %v808
        %v810 = vrcp.pop %v598
        %v811 = vmul.f32 %v598, %v810
        %v812 = vsub.f32 1.0, %v811
        %v813 = vmul.f32 %v810, %v812
        %v814 = vadd.f32 %v810, %v813
        %vm815 = vweird.f32 %v598
        %vm816 = vweird.f32 %v810
        %vm817 = vmor %vm815, %vm816
        %v818 = vsel %vm817, %v810, %v814
        %v819 = vand.u32 2147483647, %v598
        %vm820 = vcmp.eq.f32.partialorder %v819, 8.507059e+37
        %v821 = vand.u32 %v598, 2147483648
        %v822 = vor.u32 1.1754944e-38, %v821
        %v823 = vsel %vm820, %v822, %v818
        %v824 = vmul.f32 1.0, %v823
        %v825 = vrcp.pop %v599
        %v826 = vmul.f32 %v599, %v825
        %v827 = vsub.f32 1.0, %v826
        %v828 = vmul.f32 %v825, %v827
        %v829 = vadd.f32 %v825, %v828
        %vm830 = vweird.f32 %v599
        %vm831 = vweird.f32 %v825
        %vm832 = vmor %vm830, %vm831
        %v833 = vsel %vm832, %v825, %v829
        %v834 = vand.u32 2147483647, %v599
        %vm835 = vcmp.eq.f32.partialorder %v834, 8.507059e+37
        %v836 = vand.u32 %v599, 2147483648
        %v837 = vor.u32 1.1754944e-38, %v836
        %v838 = vsel %vm835, %v837, %v833
        %v839 = vmul.f32 1.0, %v838
        %v840 = vmul.f32 %v614, %v274
        %v841 = vmul.f32 %v629, %v275
        %v842 = vmul.f32 %v644, %v276
        %v843 = vmul.f32 %v659, %v277
        %v844 = vmul.f32 %v674, %v278
        %v845 = vmul.f32 %v689, %v279
        %v846 = vmul.f32 %v704, %v280
        %v847 = vmul.f32 %v719, %v281
        %v848 = vmul.f32 %v734, %v282
        %v849 = vmul.f32 %v749, %v283
        %v850 = vmul.f32 %v764, %v284
        %v851 = vmul.f32 %v779, %v285
        %v852 = vmul.f32 %v794, %v286
        %v853 = vmul.f32 %v809, %v287
        %v854 = vmul.f32 %v824, %v288
        %v855 = vmul.f32 %v839, %v289
        %v856 = vadd.f32 %v840, %v848
        %v857 = vadd.f32 %v841, %v849
        %v858 = vadd.f32 %v842, %v850
        %v859 = vadd.f32 %v843, %v851
        %v860 = vadd.f32 %v844, %v852
        %v861 = vadd.f32 %v845, %v853
        %v862 = vadd.f32 %v846, %v854
        %v863 = vadd.f32 %v847, %v855
        %864 = vst [vmem:[%s270] sm:$0xff] %v856
        %865 = vst [vmem:[%s270 + $0x8] sm:$0xff] %v857
        %866 = vst [vmem:[%s270 + $0x10] sm:$0xff] %v858
        %867 = vst [vmem:[%s270 + $0x18] sm:$0xff] %v859
        %868 = vst [vmem:[%s270 + $0x20] sm:$0xff] %v860
        %869 = vst [vmem:[%s270 + $0x28] sm:$0xff] %v861
        %870 = vst [vmem:[%s270 + $0x30] sm:$0xff] %v862
        %871 = vst [vmem:[%s270 + $0x38] sm:$0xff] %v863
        %s872 = sand.u32 %s122, 1
        %s873 = scalar_lea.sflag [#allocation4], %s872
        %s874 = sand.u32 %s122, 1
        %s875 = smul.addr %s874, 64
        %s876 = scalar_lea.vmem [#allocation8], %s875
        // Predicated region
        $region45: #{tpu_custom_call.1} parent=31 // pred_check
          %p877 = pneg %p132
        $region46: #{tpu_custom_call.1} parent=31 // pred_check_branch
          %879 = sbr.rel (%p877) target = $region48
        $region47: #{tpu_custom_call.1} parent=31 // pred_region
          %s880 = smul.u32 2, %s28
          %882 = vsyncadd %s873, 0
          %s883 = smul.addr %s27, 8
          %s884 = sadd.s32 %s880, %s883
          %s885 = smul.addr %s884, 8
          %s886 = scalar_lea.hbm %s3, %s885
          %s887 = sshll.u32 %s876, 4
          %s888 = int_to_ptr.vmem [resolvable:$true] %s887
          %s889 = sshll.u32 %s886, 4
          %s890 = int_to_ptr.hbm [resolvable:$true] %s889
          %895 = dma.vmem_to_hbm [thread:$0]  %s888, 1024, %s890, %s873, 256, 256, 16
        $region48: #{tpu_custom_call.1} parent=31 // pred_fallthru
          _
      $region32: #{tpu_custom_call.1} parent=5 // pred_fallthru
        _
      %p896 = scmp.le.s32.totalorder 2, %s18
      // Predicated region
      $region49: #{tpu_custom_call.1} parent=5 // pred_check
        %p897 = pneg %p896
      $region50: #{tpu_custom_call.1} parent=5 // pred_check_branch
        %899 = sbr.rel (%p897) target = $region52
      $region51: #{tpu_custom_call.1} parent=5 // pred_region
        %s900 = ssub.s32 %s18, 2
        // Predicated region
        $region53: #{tpu_custom_call.1} parent=51 // pred_check
          %p901 = pneg %p138
        $region54: #{tpu_custom_call.1} parent=51 // pred_check_branch
          %903 = sbr.rel (%p901) target = $region56
        $region55: #{tpu_custom_call.1} parent=51 // pred_region
          %s904 = sand.u32 %s123, 1
          %s905 = scalar_lea.sflag [#allocation4], %s904
          %s906 = sand.u32 %s123, 1
          %s907 = smul.addr %s906, 64
          %s908 = scalar_lea.vmem [#allocation8], %s907
          %910 = dma.done %s905, 1024
        $region56: #{tpu_custom_call.1} parent=51 // pred_fallthru
          _
      $region52: #{tpu_custom_call.1} parent=5 // pred_fallthru
        _
    $region6: #{tpu_custom_call.1} parent=1 // loop_footer
      %s22 = sadd.s32 1, %s18
    $region7: #{tpu_custom_call.1} parent=1 // loop_footer_branch
      %17 = sbr.rel target = $region3
    $region8: #{tpu_custom_call.1} parent=1 // loop_exit
      _
    %911 = vsyncpa [#allocation3], 1
    %s912 = scalar_lea.sflag [#allocation3], 1
    %913 = vsyncpa %s912, 1
    %914 = vsyncpa [#allocation6], 1
    %s915 = scalar_lea.sflag [#allocation6], 1
    %916 = vsyncpa %s915, 1
    %917 = vsyncpa [#allocation4], 1
    %s918 = scalar_lea.sflag [#allocation4], 1
    %919 = vsyncpa %s918, 1

</llo_original>
